<compile_context>
chip_gen: v5e
topology: v5e:2x2
jax: 0.10.0
libtpu: 0.0.40
codegen_flags: <defaults>
</compile_context>

<pallas_src>
import jax
import jax.numpy as jnp
from jax.experimental import pallas as pl
from jax.experimental.pallas import tpu as pltpu


def mlp_kernel(x_ref, w1_ref, b1_ref, w2_ref, b2_ref, w3_ref, b3_ref, o_ref):
    x = x_ref[...]                                                     # [TB, in_dim]
    h1 = jnp.dot(x, w1_ref[...], preferred_element_type=jnp.float32) + b1_ref[...]
    h1 = jnp.maximum(h1, 0.0)                                          # ReLU
    h2 = jnp.dot(h1, w2_ref[...], preferred_element_type=jnp.float32) + b2_ref[...]
    h2 = jnp.maximum(h2, 0.0)                                          # ReLU
    o_ref[...] = (jnp.dot(h2, w3_ref[...], preferred_element_type=jnp.float32)
                  + b3_ref[...]).astype(o_ref.dtype)                   # [TB, out_pad]


def pad_output_params(params):
    """One-time prep: pad the last Linear's fan_out to a multiple of 128 lanes.

    Returns (padded_params, out_dim). Call once and reuse; keeps jnp.pad off the
    per-forward launch path.
    """
    w1, b1, w2, b2, w3, b3 = params
    out_dim = w3.shape[1]
    out_pad = ((out_dim + 127) // 128) * 128
    if out_pad != out_dim:
        w3 = jnp.pad(w3, ((0, 0), (0, out_pad - out_dim)))
        b3 = jnp.pad(b3, ((0, 0), (0, out_pad - out_dim)))
    return (w1, b1, w2, b2, w3, b3), out_dim


def _pick_batch_tile(B, block_b):
    """Choose a batch tile that is (a) large, (b) a multiple of 8 (or == B),
    and (c) yields >= 2 grid steps when B >= 16 so both v7x TensorCores engage."""
    tb = min(block_b, B)
    if B >= 16:
        half = ((pl.cdiv(B, 2) + 7) // 8) * 8      # round_up(cdiv(B, 2), 8)
        tb = min(tb, half)
    if tb != B:
        tb = max(8, (tb // 8) * 8)                 # sublane-aligned when not full-B
    return tb


def network_forward(obs, padded_params, out_dim, *, block_b=1024, min_pallas_batch=512):
    """Forward pass. `padded_params` comes from pad_output_params(init_params(...))."""
    w1, b1, w2, b2, w3p, b3p = padded_params
    B, in_dim = obs.shape
    h1 = w1.shape[1]
    h2 = w2.shape[1]
    out_pad = w3p.shape[1]

    # --- tiny-batch bypass: the Pallas call would be pure fixed overhead ---
    if B < min_pallas_batch:
        h = jnp.maximum(obs @ w1 + b1, 0.0)
        h = jnp.maximum(h @ w2 + b2, 0.0)
        return (h @ w3p + b3p)[:, :out_dim]

    # --- batch tiling: weights VMEM-resident, obs/out tiled over a 1-D batch grid ---
    tb = _pick_batch_tile(B, block_b)
    grid = (pl.cdiv(B, tb),)

    def batch_map(i):
        return (i, 0)

    def resident_map(i):
        return (0, 0)      # constant index -> block stays resident across grid steps

    in_specs = [
        pl.BlockSpec((tb, in_dim), batch_map),        # obs: streamed batch tiles
        pl.BlockSpec((in_dim, h1), resident_map),     # w1 (VMEM-resident)
        pl.BlockSpec((1, h1), resident_map),          # b1
        pl.BlockSpec((h1, h2), resident_map),         # w2
        pl.BlockSpec((1, h2), resident_map),          # b2
        pl.BlockSpec((h2, out_pad), resident_map),    # w3 (lane-padded)
        pl.BlockSpec((1, out_pad), resident_map),     # b3 (lane-padded)
    ]
    out_spec = pl.BlockSpec((tb, out_pad), batch_map)

    param_bytes = sum(int(p.size) * p.dtype.itemsize
                      for p in (w1, b1, w2, b2, w3p, b3p))
    cost = pl.CostEstimate(
        flops=2 * B * (in_dim * h1 + h1 * h2 + h2 * out_dim),
        transcendentals=0,
        bytes_accessed=int(obs.size) * obs.dtype.itemsize
        + B * out_pad * 4
        + param_bytes,
    )

    out_padded = pl.pallas_call(
        mlp_kernel,
        out_shape=jax.ShapeDtypeStruct((B, out_pad), jnp.float32),
        grid=grid,
        in_specs=in_specs,
        out_specs=out_spec,
        compiler_params=pltpu.CompilerParams(
            dimension_semantics=("parallel",),  # shard batch tiles across TCs on v7x
        ),
        cost_estimate=cost,
    )(obs, w1, b1, w2, b2, w3p, b3p)

    return out_padded[:, :out_dim]


def init_params(key, in_dim, out_dim, hidden_layer=(64, 64)):
    """Deterministic init matching PyTorch nn.Linear defaults
    (uniform(-1/sqrt(fan_in), 1/sqrt(fan_in)) for weights and biases)."""
    dims = [in_dim] + list(hidden_layer) + [out_dim]
    params = []
    for i in range(len(dims) - 1):
        fan_in, fan_out = dims[i], dims[i + 1]
        key, kw, kb = jax.random.split(key, 3)
        bound = 1.0 / jnp.sqrt(fan_in)
        # stored as [fan_in, fan_out] (transpose of PyTorch's [out, in]) -> y = x @ W + b
        w = jax.random.uniform(kw, (fan_in, fan_out), jnp.float32, -bound, bound)
        b = jax.random.uniform(kb, (1, fan_out), jnp.float32, -bound, bound)
        params.extend([w, b])
    return tuple(params)


def _reference(obs, params):
    w1, b1, w2, b2, w3, b3 = params
    h = jnp.maximum(obs @ w1 + b1, 0.0)
    h = jnp.maximum(h @ w2 + b2, 0.0)
    return h @ w3 + b3


if __name__ == "__main__":
    key = jax.random.PRNGKey(0)
    in_dim, out_dim = 32, 16
    hidden_layer = (64, 64)

    k_obs_small, k_obs_big, k_params = jax.random.split(key, 3)
    params = init_params(k_params, in_dim, out_dim, hidden_layer)
    padded_params, od = pad_output_params(params)

    # 1) Small batch, forced through the Pallas kernel (min_pallas_batch=0).
    B_small = 8
    obs_small = jax.random.normal(k_obs_small, (B_small, in_dim), dtype=jnp.float32)
    out_small = network_forward(obs_small, padded_params, od, min_pallas_batch=0)
    jax.block_until_ready(out_small)
    ref_small = _reference(obs_small, params)
    assert out_small.shape == (B_small, out_dim)
    assert jnp.allclose(out_small, ref_small, atol=1e-5, rtol=1e-5)

    # 2) Larger batch through the default path: kernel with 2 grid steps of 512
    #    (exercises megacore sharding on v7x and the bigger-tile pipeline).
    B_big = 1024
    obs_big = jax.random.normal(k_obs_big, (B_big, in_dim), dtype=jnp.float32)
    out_big = network_forward(obs_big, padded_params, od)
    jax.block_until_ready(out_big)
    ref_big = _reference(obs_big, params)
    assert out_big.shape == (B_big, out_dim)
    assert jnp.allclose(out_big, ref_big, atol=1e-5, rtol=1e-5)

    print("KERNEL_OK")
</pallas_src>

<mosaic_0001>
module attributes {stable_mosaic.version = 11 : i64} {
  func.func @mlp_kernel(%arg0: i32, %arg1: memref<8x32xf32, #tpu.memory_space<vmem>>, %arg2: memref<32x64xf32, #tpu.memory_space<vmem>>, %arg3: memref<1x64xf32, #tpu.memory_space<vmem>>, %arg4: memref<64x64xf32, #tpu.memory_space<vmem>>, %arg5: memref<1x64xf32, #tpu.memory_space<vmem>>, %arg6: memref<64x128xf32, #tpu.memory_space<vmem>>, %arg7: memref<1x128xf32, #tpu.memory_space<vmem>>, %arg8: memref<8x128xf32, #tpu.memory_space<vmem>>) attributes {dimension_semantics = [#tpu.dimension_semantics<parallel>], iteration_bounds = array<i64: 1>, scalar_prefetch = 0 : i64, scratch_operands = 0 : i64, tpu.core_type = #tpu.core_type<tc>, window_params = [{transform_indices = @transform_0, window_bounds = array<i64: 8, 32>}, {pipeline_mode = #tpu.pipeline_mode<synchronous>, transform_indices = @transform_1, window_bounds = array<i64: 32, 64>}, {pipeline_mode = #tpu.pipeline_mode<synchronous>, transform_indices = @transform_2, window_bounds = array<i64: 1, 64>}, {pipeline_mode = #tpu.pipeline_mode<synchronous>, transform_indices = @transform_3, window_bounds = array<i64: 64, 64>}, {pipeline_mode = #tpu.pipeline_mode<synchronous>, transform_indices = @transform_4, window_bounds = array<i64: 1, 64>}, {pipeline_mode = #tpu.pipeline_mode<synchronous>, transform_indices = @transform_5, window_bounds = array<i64: 64, 128>}, {pipeline_mode = #tpu.pipeline_mode<synchronous>, transform_indices = @transform_6, window_bounds = array<i64: 1, 128>}, {transform_indices = @transform_7, window_bounds = array<i64: 8, 128>}]} {
    %c0 = arith.constant 0 : index
    %c0_0 = arith.constant 0 : index
    %0 = vector.load %arg1[%c0, %c0_0] : memref<8x32xf32, #tpu.memory_space<vmem>>, vector<8x32xf32>
    %c0_1 = arith.constant 0 : index
    %c0_2 = arith.constant 0 : index
    %1 = vector.load %arg2[%c0_1, %c0_2] : memref<32x64xf32, #tpu.memory_space<vmem>>, vector<32x64xf32>
    %cst = arith.constant dense<0.000000e+00> : vector<8x64xf32>
    %2 = tpu.matmul %0, %1, %cst {dimension_numbers = #tpu.dot_dimension_numbers<[1], [0], [0], [1], [0, 0, 1, 1], [], []>} : vector<8x32xf32>, vector<32x64xf32>, vector<8x64xf32> -> vector<8x64xf32>
    %c0_3 = arith.constant 0 : index
    %c0_4 = arith.constant 0 : index
    %3 = vector.load %arg3[%c0_3, %c0_4] : memref<1x64xf32, #tpu.memory_space<vmem>>, vector<1x64xf32>
    %4 = vector.broadcast %3 : vector<1x64xf32> to vector<8x64xf32>
    %5 = arith.addf %2, %4 : vector<8x64xf32>
    %cst_5 = arith.constant 0.000000e+00 : f32
    %6 = vector.broadcast %cst_5 : f32 to vector<8x64xf32>
    %7 = arith.maximumf %5, %6 : vector<8x64xf32>
    %c0_6 = arith.constant 0 : index
    %c0_7 = arith.constant 0 : index
    %8 = vector.load %arg4[%c0_6, %c0_7] : memref<64x64xf32, #tpu.memory_space<vmem>>, vector<64x64xf32>
    %cst_8 = arith.constant dense<0.000000e+00> : vector<8x64xf32>
    %9 = tpu.matmul %7, %8, %cst_8 {dimension_numbers = #tpu.dot_dimension_numbers<[1], [0], [0], [1], [0, 0, 1, 1], [], []>} : vector<8x64xf32>, vector<64x64xf32>, vector<8x64xf32> -> vector<8x64xf32>
    %c0_9 = arith.constant 0 : index
    %c0_10 = arith.constant 0 : index
    %10 = vector.load %arg5[%c0_9, %c0_10] : memref<1x64xf32, #tpu.memory_space<vmem>>, vector<1x64xf32>
    %11 = vector.broadcast %10 : vector<1x64xf32> to vector<8x64xf32>
    %12 = arith.addf %9, %11 : vector<8x64xf32>
    %cst_11 = arith.constant 0.000000e+00 : f32
    %13 = vector.broadcast %cst_11 : f32 to vector<8x64xf32>
    %14 = arith.maximumf %12, %13 : vector<8x64xf32>
    %c0_12 = arith.constant 0 : index
    %c0_13 = arith.constant 0 : index
    %15 = vector.load %arg6[%c0_12, %c0_13] : memref<64x128xf32, #tpu.memory_space<vmem>>, vector<64x128xf32>
    %cst_14 = arith.constant dense<0.000000e+00> : vector<8x128xf32>
    %16 = tpu.matmul %14, %15, %cst_14 {dimension_numbers = #tpu.dot_dimension_numbers<[1], [0], [0], [1], [0, 0, 1, 1], [], []>} : vector<8x64xf32>, vector<64x128xf32>, vector<8x128xf32> -> vector<8x128xf32>
    %c0_15 = arith.constant 0 : index
    %c0_16 = arith.constant 0 : index
    %17 = vector.load %arg7[%c0_15, %c0_16] : memref<1x128xf32, #tpu.memory_space<vmem>>, vector<1x128xf32>
    %18 = vector.broadcast %17 : vector<1x128xf32> to vector<8x128xf32>
    %19 = arith.addf %16, %18 : vector<8x128xf32>
    %c0_17 = arith.constant 0 : index
    %c0_18 = arith.constant 0 : index
    %20 = vector.load %arg8[%c0_17, %c0_18] : memref<8x128xf32, #tpu.memory_space<vmem>>, vector<8x128xf32>
    tpu.vector_store %arg8[%c0_17, %c0_18], %19 {strides = array<i32>} : memref<8x128xf32, #tpu.memory_space<vmem>>, vector<8x128xf32>,
    return
  }
  func.func @transform_0(%arg0: i32) -> (i32, i32) {
    %c0_i32 = arith.constant 0 : i32
    %c0_i32_0 = arith.constant 0 : i32
    return %arg0, %c0_i32 : i32, i32
  }
  func.func @transform_1(%arg0: i32) -> (i32, i32) {
    %c0_i32 = arith.constant 0 : i32
    %c0_i32_0 = arith.constant 0 : i32
    %c0_i32_1 = arith.constant 0 : i32
    return %c0_i32, %c0_i32_0 : i32, i32
  }
  func.func @transform_2(%arg0: i32) -> (i32, i32) {
    %c0_i32 = arith.constant 0 : i32
    %c0_i32_0 = arith.constant 0 : i32
    %c0_i32_1 = arith.constant 0 : i32
    return %c0_i32, %c0_i32_0 : i32, i32
  }
  func.func @transform_3(%arg0: i32) -> (i32, i32) {
    %c0_i32 = arith.constant 0 : i32
    %c0_i32_0 = arith.constant 0 : i32
    %c0_i32_1 = arith.constant 0 : i32
    return %c0_i32, %c0_i32_0 : i32, i32
  }
  func.func @transform_4(%arg0: i32) -> (i32, i32) {
    %c0_i32 = arith.constant 0 : i32
    %c0_i32_0 = arith.constant 0 : i32
    %c0_i32_1 = arith.constant 0 : i32
    return %c0_i32, %c0_i32_0 : i32, i32
  }
  func.func @transform_5(%arg0: i32) -> (i32, i32) {
    %c0_i32 = arith.constant 0 : i32
    %c0_i32_0 = arith.constant 0 : i32
    %c0_i32_1 = arith.constant 0 : i32
    return %c0_i32, %c0_i32_0 : i32, i32
  }
  func.func @transform_6(%arg0: i32) -> (i32, i32) {
    %c0_i32 = arith.constant 0 : i32
    %c0_i32_0 = arith.constant 0 : i32
    %c0_i32_1 = arith.constant 0 : i32
    return %c0_i32, %c0_i32_0 : i32, i32
  }
  func.func @transform_7(%arg0: i32) -> (i32, i32) {
    %c0_i32 = arith.constant 0 : i32
    %c0_i32_0 = arith.constant 0 : i32
    return %arg0, %c0_i32 : i32, i32
  }
}

</mosaic_0001>

<llo_original>
// kernel: tpu_custom_call.1
$region0: #{tpu_custom_call.1}
  #allocation0 [shape = 'u32[]', space=smem, size = 0x4, offset = 0x4, fixed_abs, tag = 'smem constant byte address 0x4 - core index']
  #allocation1 [shape = 'u32[72,128]{1,0:T(1,128)}', space=vmem, size = 0x9000, scoped, tag = 'internal scratch']
  %s0 = inlined_call_operand.hbm [shape: f32[8,32], index: 0, kind: input, shape index: {}]
  %s1 = inlined_call_operand.hbm [shape: f32[32,64], index: 1, kind: input, shape index: {}]
  %s2 = inlined_call_operand.vmem [shape: f32[1,64], index: 2, kind: input, shape index: {}]
  %s3 = inlined_call_operand.hbm [shape: f32[64,64], index: 3, kind: input, shape index: {}]
  %s4 = inlined_call_operand.vmem [shape: f32[1,64], index: 4, kind: input, shape index: {}]
  %s5 = inlined_call_operand.hbm [shape: f32[64,128], index: 5, kind: input, shape index: {}]
  %s6 = inlined_call_operand.vmem [shape: f32[1,128], index: 6, kind: input, shape index: {}]
  %s7 = inlined_call_operand.hbm [shape: f32[8,128], index: 7, kind: output, shape index: {}]
  %s8 = sld [smem:[#allocation0]]
  $region54: #{tpu_custom_call.1} parent=0
    _
  %s10 = ssub.s32 1, %s8
  %s11 = scalar_select 0, %s10, %s8
  $region1: #{tpu_custom_call.1} parent=0
    #allocation2 [shape = 'u8[4096]{0}', space=vmem, size = 0x1000, scoped, tag = 'input window, operand 0, single buffered']
    #allocation3 [shape = 's32[1]{0}', space=sflag, size = 0x4, scoped, tag = 'scoped memory for tpu_custom_call.1']
    #allocation4 [shape = 's32[1]{0}', space=sflag, size = 0x4, scoped, tag = 'scoped memory for tpu_custom_call.1']
    #allocation5 [shape = 'u8[16384]{0}', space=vmem, size = 0x4000, scoped, tag = 'input window, operand 1, single buffered']
    #allocation6 [shape = 's32[1]{0}', space=sflag, size = 0x4, scoped, tag = 'scoped memory for tpu_custom_call.1']
    #allocation7 [shape = 'u8[32768]{0}', space=vmem, size = 0x8000, scoped, tag = 'input window, operand 3, single buffered']
    #allocation8 [shape = 'u8[32768]{0}', space=vmem, size = 0x8000, scoped, tag = 'input window, operand 5, single buffered']
    #allocation9 [shape = 's32[1]{0}', space=sflag, size = 0x4, scoped, tag = 'scoped memory for tpu_custom_call.1']
    #allocation10 [shape = 'u8[4096]{0}', space=vmem, size = 0x1000, scoped, tag = 'output window, operand 0, single buffered']
    %12 = vsyncpa [#allocation3], 0
    %13 = vsyncpa [#allocation6], 0
    %14 = vsyncpa [#allocation9], 0
    %15 = vsyncpa [#allocation4], 0
    // Predicated region
    $region2: #{tpu_custom_call.1} parent=1 // pred_check
      _
    $region3: #{tpu_custom_call.1} parent=1 // pred_check_branch
      %17 = sbr.rel (0) target = $region5
    $region4: #{tpu_custom_call.1} parent=1 // pred_region
      %19 = vsyncadd [#allocation3], 0
      %s21 = sshll.u32 %s0, 4
      %s22 = int_to_ptr.hbm [resolvable:$true] %s21
      %s23 = sshll.u32 [#allocation2], 4
      %s24 = int_to_ptr.vmem [resolvable:$true] %s23
      %26 = dma.hbm_to_vmem [thread:$0]  %s22, 128, %s24, [#allocation3]
    $region5: #{tpu_custom_call.1} parent=1 // pred_fallthru
      _
    // Predicated region
    $region6: #{tpu_custom_call.1} parent=1 // pred_check
      _
    $region7: #{tpu_custom_call.1} parent=1 // pred_check_branch
      %28 = sbr.rel (0) target = $region9
    $region8: #{tpu_custom_call.1} parent=1 // pred_region
      %30 = vsyncadd [#allocation6], 0
      %s31 = sshll.u32 %s1, 4
      %s32 = int_to_ptr.hbm [resolvable:$true] %s31
      %s33 = sshll.u32 [#allocation5], 4
      %s34 = int_to_ptr.vmem [resolvable:$true] %s33
      %39 = dma.hbm_to_vmem [thread:$0]  %s32, 512, %s34, [#allocation6], 128, 128, 8
    $region9: #{tpu_custom_call.1} parent=1 // pred_fallthru
      _
    // Predicated region
    $region10: #{tpu_custom_call.1} parent=1 // pred_check
      _
    $region11: #{tpu_custom_call.1} parent=1 // pred_check_branch
      %41 = sbr.rel (0) target = $region13
    $region12: #{tpu_custom_call.1} parent=1 // pred_region
      _
    $region13: #{tpu_custom_call.1} parent=1 // pred_fallthru
      _
    // Predicated region
    $region14: #{tpu_custom_call.1} parent=1 // pred_check
      _
    $region15: #{tpu_custom_call.1} parent=1 // pred_check_branch
      %43 = sbr.rel (0) target = $region17
    $region16: #{tpu_custom_call.1} parent=1 // pred_region
      %45 = vsyncadd [#allocation6], 0
      %s46 = sshll.u32 %s3, 4
      %s47 = int_to_ptr.hbm [resolvable:$true] %s46
      %s48 = sshll.u32 [#allocation7], 4
      %s49 = int_to_ptr.vmem [resolvable:$true] %s48
      %54 = dma.hbm_to_vmem [thread:$0]  %s47, 1024, %s49, [#allocation6], 128, 128, 8
    $region17: #{tpu_custom_call.1} parent=1 // pred_fallthru
      _
    // Predicated region
    $region18: #{tpu_custom_call.1} parent=1 // pred_check
      _
    $region19: #{tpu_custom_call.1} parent=1 // pred_check_branch
      %56 = sbr.rel (0) target = $region21
    $region20: #{tpu_custom_call.1} parent=1 // pred_region
      _
    $region21: #{tpu_custom_call.1} parent=1 // pred_fallthru
      _
    // Predicated region
    $region22: #{tpu_custom_call.1} parent=1 // pred_check
      _
    $region23: #{tpu_custom_call.1} parent=1 // pred_check_branch
      %58 = sbr.rel (0) target = $region25
    $region24: #{tpu_custom_call.1} parent=1 // pred_region
      %60 = vsyncadd [#allocation9], 0
      %s61 = sshll.u32 %s5, 4
      %s62 = int_to_ptr.hbm [resolvable:$true] %s61
      %s63 = sshll.u32 [#allocation8], 4
      %s64 = int_to_ptr.vmem [resolvable:$true] %s63
      %69 = dma.hbm_to_vmem [thread:$0]  %s62, 1024, %s64, [#allocation9], 128, 128, 8
    $region25: #{tpu_custom_call.1} parent=1 // pred_fallthru
      _
    // Predicated region
    $region26: #{tpu_custom_call.1} parent=1 // pred_check
      _
    $region27: #{tpu_custom_call.1} parent=1 // pred_check_branch
      %71 = sbr.rel (0) target = $region29
    $region28: #{tpu_custom_call.1} parent=1 // pred_region
      _
    $region29: #{tpu_custom_call.1} parent=1 // pred_fallthru
      _
    // Predicated region
    $region30: #{tpu_custom_call.1} parent=1 // pred_check
      _
    $region31: #{tpu_custom_call.1} parent=1 // pred_check_branch
      %73 = sbr.rel (0) target = $region33
    $region32: #{tpu_custom_call.1} parent=1 // pred_region
      %75 = dma.done [#allocation3], 128
    $region33: #{tpu_custom_call.1} parent=1 // pred_fallthru
      _
    // Predicated region
    $region34: #{tpu_custom_call.1} parent=1 // pred_check
      _
    $region35: #{tpu_custom_call.1} parent=1 // pred_check_branch
      %77 = sbr.rel (0) target = $region37
    $region36: #{tpu_custom_call.1} parent=1 // pred_region
      %79 = dma.done [#allocation6], 512
    $region37: #{tpu_custom_call.1} parent=1 // pred_fallthru
      _
    // Predicated region
    $region38: #{tpu_custom_call.1} parent=1 // pred_check
      _
    $region39: #{tpu_custom_call.1} parent=1 // pred_check_branch
      %81 = sbr.rel (0) target = $region41
    $region40: #{tpu_custom_call.1} parent=1 // pred_region
      %83 = dma.done [#allocation6], 1024
    $region41: #{tpu_custom_call.1} parent=1 // pred_fallthru
      _
    // Predicated region
    $region42: #{tpu_custom_call.1} parent=1 // pred_check
      _
    $region43: #{tpu_custom_call.1} parent=1 // pred_check_branch
      %85 = sbr.rel (0) target = $region45
    $region44: #{tpu_custom_call.1} parent=1 // pred_region
      %87 = dma.done [#allocation9], 1024
    $region45: #{tpu_custom_call.1} parent=1 // pred_fallthru
      _
    %v88 = vld [vmem:[#allocation2] sm:$0xff]
    %v89 = vld [vmem:[#allocation5] sm:$0xff]
    %v90 = vld [vmem:[#allocation5 + $0x8] sm:$0xff]
    %v91 = vld [vmem:[#allocation5 + $0x10] sm:$0xff]
    %v92 = vld [vmem:[#allocation5 + $0x18] sm:$0xff]
    %v93 = vld [vmem:[%s2] sm:$0x1]
    %v95 = vperm.slane %v93, 0
    %vm97 = vcmask 261120
    %v99 = vsel %vm97, %v88, 0
    %101 = vmatpush.msra.mxu0 0.0
    %102 = vmatpush.msra.mxu0 0.0
    %103 = vmatpush.msra.mxu0 0.0
    %104 = vmatpush.msra.mxu0 0.0
    %105 = vmatpush.msra.mxu0 0.0
    %106 = vmatpush.msra.mxu0 0.0
    %107 = vmatpush.msra.mxu0 0.0
    %108 = vmatpush.msra.mxu0 0.0
    %109 = vmatpush.msra.mxu0 0.0
    %110 = vmatpush.msra.mxu0 0.0
    %111 = vmatpush.msra.mxu0 0.0
    %112 = vmatpush.msra.mxu0 0.0
    %113 = vmatpush.msra.mxu0 %v92
    %114 = vmatpush.msra.mxu0 %v91
    %115 = vmatpush.msra.mxu0 %v90
    %116 = vmatpush.msra.mxu0 %v89
    %117 = vmatmul.f32.gmra.mxu0 %v99
    %v118 = vpop.f32.mrf.mxu0
    %v119 = vadd.f32 %v95, %v118
    %120 = vdwg.mxu0
    %v121 = vmax.f32 %v119, 0.0
    %v122 = vld [vmem:[#allocation7] sm:$0xff]
    %v123 = vld [vmem:[#allocation7 + $0x8] sm:$0xff]
    %v124 = vld [vmem:[#allocation7 + $0x10] sm:$0xff]
    %v125 = vld [vmem:[#allocation7 + $0x18] sm:$0xff]
    %v126 = vld [vmem:[#allocation7 + $0x20] sm:$0xff]
    %v127 = vld [vmem:[#allocation7 + $0x28] sm:$0xff]
    %v128 = vld [vmem:[#allocation7 + $0x30] sm:$0xff]
    %v129 = vld [vmem:[#allocation7 + $0x38] sm:$0xff]
    %v130 = vld [vmem:[%s4] sm:$0x1]
    %v132 = vperm.slane %v130, 0
    %vm134 = vcmask 523264
    %v136 = vsel %vm134, %v121, 0
    %138 = vmatpush.msra.mxu0 0.0
    %139 = vmatpush.msra.mxu0 0.0
    %140 = vmatpush.msra.mxu0 0.0
    %141 = vmatpush.msra.mxu0 0.0
    %142 = vmatpush.msra.mxu0 0.0
    %143 = vmatpush.msra.mxu0 0.0
    %144 = vmatpush.msra.mxu0 0.0
    %145 = vmatpush.msra.mxu0 0.0
    %146 = vmatpush.msra.mxu0 %v129
    %147 = vmatpush.msra.mxu0 %v128
    %148 = vmatpush.msra.mxu0 %v127
    %149 = vmatpush.msra.mxu0 %v126
    %150 = vmatpush.msra.mxu0 %v125
    %151 = vmatpush.msra.mxu0 %v124
    %152 = vmatpush.msra.mxu0 %v123
    %153 = vmatpush.msra.mxu0 %v122
    %154 = vmatmul.f32.gmra.mxu0 %v136
    %v155 = vpop.f32.mrf.mxu0
    %v156 = vadd.f32 %v132, %v155
    %157 = vdwg.mxu0
    %v158 = vmax.f32 %v156, 0.0
    %v159 = vld [vmem:[#allocation8] sm:$0xff]
    %v160 = vld [vmem:[#allocation8 + $0x8] sm:$0xff]
    %v161 = vld [vmem:[#allocation8 + $0x10] sm:$0xff]
    %v162 = vld [vmem:[#allocation8 + $0x18] sm:$0xff]
    %v163 = vld [vmem:[#allocation8 + $0x20] sm:$0xff]
    %v164 = vld [vmem:[#allocation8 + $0x28] sm:$0xff]
    %v165 = vld [vmem:[#allocation8 + $0x30] sm:$0xff]
    %v166 = vld [vmem:[#allocation8 + $0x38] sm:$0xff]
    %v167 = vld [vmem:[%s6] sm:$0x1]
    %v169 = vperm.slane %v167, 0
    %v172 = vsel %vm134, %v158, 0
    %174 = vmatpush.msra.mxu0 0.0
    %175 = vmatpush.msra.mxu0 0.0
    %176 = vmatpush.msra.mxu0 0.0
    %177 = vmatpush.msra.mxu0 0.0
    %178 = vmatpush.msra.mxu0 0.0
    %179 = vmatpush.msra.mxu0 0.0
    %180 = vmatpush.msra.mxu0 0.0
    %181 = vmatpush.msra.mxu0 0.0
    %182 = vmatpush.msra.mxu0 %v166
    %183 = vmatpush.msra.mxu0 %v165
    %184 = vmatpush.msra.mxu0 %v164
    %185 = vmatpush.msra.mxu0 %v163
    %186 = vmatpush.msra.mxu0 %v162
    %187 = vmatpush.msra.mxu0 %v161
    %188 = vmatpush.msra.mxu0 %v160
    %189 = vmatpush.msra.mxu0 %v159
    %190 = vmatmul.f32.gmra.mxu0 %v172
    %v191 = vpop.f32.mrf.mxu0
    %v192 = vadd.f32 %v169, %v191
    %193 = vdwg.mxu0
    %194 = vst [vmem:[#allocation10] sm:$0xff] %v192
    // Predicated region
    $region46: #{tpu_custom_call.1} parent=1 // pred_check
      _
    $region47: #{tpu_custom_call.1} parent=1 // pred_check_branch
      %196 = sbr.rel (0) target = $region49
    $region48: #{tpu_custom_call.1} parent=1 // pred_region
      %198 = vsyncadd [#allocation4], 0
      %s200 = sshll.u32 [#allocation10], 4
      %s201 = int_to_ptr.vmem [resolvable:$true] %s200
      %s202 = sshll.u32 %s7, 4
      %s203 = int_to_ptr.hbm [resolvable:$true] %s202
      %205 = dma.vmem_to_hbm [thread:$0]  %s201, 128, %s203, [#allocation4]
    $region49: #{tpu_custom_call.1} parent=1 // pred_fallthru
      _
    // Predicated region
    $region50: #{tpu_custom_call.1} parent=1 // pred_check
      _
    $region51: #{tpu_custom_call.1} parent=1 // pred_check_branch
      %207 = sbr.rel (0) target = $region53
    $region52: #{tpu_custom_call.1} parent=1 // pred_region
      %209 = dma.done [#allocation4], 128
    $region53: #{tpu_custom_call.1} parent=1 // pred_fallthru
      _
    %210 = vsyncpa [#allocation3], 1
    %211 = vsyncpa [#allocation6], 1
    %212 = vsyncpa [#allocation9], 1
    %213 = vsyncpa [#allocation4], 1

</llo_original>
